<compile_context>
chip_gen: v6e
topology: v6e:2x2x1
jax: 0.10.0
libtpu: 0.0.40
codegen_flags: <defaults>
</compile_context>

<pallas_src>
import functools

import jax
import jax.numpy as jnp
from jax.experimental import pallas as pl
from jax.experimental.pallas import tpu as pltpu


_COMPILER_PARAMS = pltpu.CompilerParams(
    dimension_semantics=("parallel",),
    vmem_limit_bytes=32 * 1024 * 1024,
)


# ---------------------------------------------------------------------------
# Bilinear-upsample interpolation matrix (align_corners=True), built in JAX glue.
# ---------------------------------------------------------------------------
def _bilinear_matrix(out_size, in_size):
    if in_size == 1:
        return jnp.ones((out_size, 1), jnp.float32)
    i = jnp.arange(out_size, dtype=jnp.float32)
    src = i * (in_size - 1) / (out_size - 1)          # align_corners=True mapping
    lo = jnp.clip(jnp.floor(src).astype(jnp.int32), 0, in_size - 2)
    frac = src - lo.astype(jnp.float32)
    rows = jnp.arange(out_size)
    mat = jnp.zeros((out_size, in_size), jnp.float32)
    mat = mat.at[rows, lo].add(1.0 - frac)
    mat = mat.at[rows, lo + 1].add(frac)
    return mat


# ---------------------------------------------------------------------------
# Kernel 1: separable bilinear 2x upsample (per batch element).
#   x_ref:  [C, H, W]   (f32)
#   awt_ref:[W, W2]     (f32)   (Aw^T)
#   ah_ref: [H2, H]     (f32)   (Ah)
#   o_ref:  [C, H2, W2] (bf16)
# ---------------------------------------------------------------------------
def _upsample_kernel(x_ref, awt_ref, ah_ref, o_ref):
    C, H, W = x_ref.shape
    W2 = awt_ref.shape[1]
    H2 = ah_ref.shape[0]
    # W-pass, all channels at once: [C*H, W] @ [W, W2]   (f32, tiny)
    t = jnp.dot(x_ref[...].reshape(C * H, W), awt_ref[...],
                preferred_element_type=jnp.float32)
    t = t.reshape(C, H, W2)
    # H-pass as ONE batched matmul over the channel dim (no Python unroll,
    # no per-channel masked stores): [C, H2, H] x [C, H, W2] -> [C, H2, W2]
    ahb = jnp.broadcast_to(ah_ref[...][None, :, :], (C, H2, H))
    out = jax.lax.dot_general(
        ahb, t,
        dimension_numbers=(((2,), (1,)), ((0,), (0,))),
        preferred_element_type=jnp.float32)
    o_ref[...] = out.astype(o_ref.dtype)               # single full-block store, bf16


def bilinear_upsample_x2(x):
    N, C, H, W = x.shape
    H2, W2 = 2 * H, 2 * W
    ah = _bilinear_matrix(H2, H)                        # [H2, H] f32
    awt = _bilinear_matrix(W2, W).T                     # [W, W2] f32
    return pl.pallas_call(
        _upsample_kernel,
        out_shape=jax.ShapeDtypeStruct((N, C, H2, W2), jnp.bfloat16),
        grid=(N,),
        in_specs=[
            pl.BlockSpec((None, C, H, W), lambda n: (n, 0, 0, 0)),
            pl.BlockSpec((W, W2), lambda n: (0, 0)),
            pl.BlockSpec((H2, H), lambda n: (0, 0)),
        ],
        out_specs=pl.BlockSpec((None, C, H2, W2), lambda n: (n, 0, 0, 0)),
        compiler_params=_COMPILER_PARAMS,
    )(x.astype(jnp.float32), awt, ah)


# ---------------------------------------------------------------------------
# Kernel 2: fused conv3x3 (in-kernel im2col via shifted flat slices)
#           + InstanceNorm2d + ReLU, per batch element.
#   x_ref:    [Cin, L1]  (bf16)  reflect-padded image flattened row-major with
#                                row stride Wp = W+2, zero slack at the end.
#   w_ref:    [9, Cout, Cin] (bf16)  per-tap weight matrices (tap = ky*3+kx).
#   mask_ref: [1, Lq]    (f32)   1.0 on the H*W valid columns (q % Wp < W).
#   o_ref:    [Cout, Lq]         output in the same flat stride-Wp layout.
#
# Identity used: for output pixel q = y*Wp + x (x < W),
#   padded[(y+ky)*Wp + (x+kx)] == flat[q + ky*Wp + kx]
# so tap (ky,kx) just needs the contiguous slice flat[:, off : off+Lq], off = ky*Wp+kx.
# ---------------------------------------------------------------------------
def _conv_in_relu_kernel(x_ref, w_ref, mask_ref, o_ref, *, Wp, hw, eps):
    Cout, Lq = o_ref.shape
    acc = jnp.zeros((Cout, Lq), jnp.float32)
    for ky in range(3):                                  # 9 static taps
        for kx in range(3):
            off = ky * Wp + kx
            acc = acc + jnp.dot(
                w_ref[ky * 3 + kx],                      # [Cout, Cin] bf16
                x_ref[:, off:off + Lq],                  # [Cin,  Lq ] bf16 (shifted slice)
                preferred_element_type=jnp.float32)
    # InstanceNorm (affine=False), centered two-pass variance, masked to valid columns.
    m = mask_ref[...]                                    # [1, Lq] f32
    inv_hw = 1.0 / hw
    mean = jnp.sum(acc * m, axis=1, keepdims=True) * inv_hw
    cen = (acc - mean) * m
    var = jnp.sum(cen * cen, axis=1, keepdims=True) * inv_hw
    y = (acc - mean) * jax.lax.rsqrt(var + eps)
    o_ref[...] = jnp.maximum(y, 0.0).astype(o_ref.dtype)  # ReLU


def conv3x3_in_relu(x, w_taps, out_dtype, eps=1e-5):
    """x: [N, Cin, H, W]; w_taps: [9, Cout, Cin] bf16 (tap index = ky*3+kx)."""
    N, Cin, H, W = x.shape
    Cout = w_taps.shape[1]
    Hp, Wp = H + 2, W + 2
    Lq = H * Wp                                          # flat output length (with pad cols)
    L1 = Hp * Wp + Wp                                    # slack so tap (2,2) slice is in-bounds
    # reflect padding (padding_mode='reflect', padding=1) + flatten: cheap glue, NOT 9x im2col
    xp = jnp.pad(x.astype(jnp.bfloat16), ((0, 0), (0, 0), (1, 1), (1, 1)),
                 mode="reflect")
    flat = xp.reshape(N, Cin, Hp * Wp)
    flat = jnp.pad(flat, ((0, 0), (0, 0), (0, L1 - Hp * Wp)))
    mask = ((jnp.arange(Lq) % Wp) < W).astype(jnp.float32)[None, :]
    kern = functools.partial(_conv_in_relu_kernel, Wp=Wp, hw=float(H * W), eps=eps)
    out_flat = pl.pallas_call(
        kern,
        out_shape=jax.ShapeDtypeStruct((N, Cout, Lq), out_dtype),
        grid=(N,),
        in_specs=[
            pl.BlockSpec((None, Cin, L1), lambda n: (n, 0, 0)),
            pl.BlockSpec((9, Cout, Cin), lambda n: (0, 0, 0)),
            pl.BlockSpec((1, Lq), lambda n: (0, 0)),
        ],
        out_specs=pl.BlockSpec((None, Cout, Lq), lambda n: (n, 0, 0)),
        compiler_params=_COMPILER_PARAMS,
    )(flat, w_taps, mask)
    # drop the 2 don't-care pad columns per row
    return out_flat.reshape(N, Cout, H, Wp)[:, :, :, :W]


# ---------------------------------------------------------------------------
# Up module (method='bilinear')
# ---------------------------------------------------------------------------
class UpPallas:
    def __init__(self, in_channels, out_channels, key):
        mid_channels = in_channels // 2
        k1, k2 = jax.random.split(key)
        # deterministic Kaiming-style init (synthetic weights, no checkpoint)
        w1 = jax.random.normal(
            k1, (mid_channels, in_channels, 3, 3), jnp.float32
        ) * (2.0 / (in_channels * 9)) ** 0.5
        w2 = jax.random.normal(
            k2, (out_channels, mid_channels, 3, 3), jnp.float32
        ) * (2.0 / (mid_channels * 9)) ** 0.5
        # per-tap layout [9, Cout, Cin], tap index = ky*3 + kx
        self.w1 = jnp.transpose(w1, (2, 3, 0, 1)).reshape(
            9, mid_channels, in_channels).astype(jnp.bfloat16)
        self.w2 = jnp.transpose(w2, (2, 3, 0, 1)).reshape(
            9, out_channels, mid_channels).astype(jnp.bfloat16)

    def __call__(self, x1, x2=None):
        x1 = bilinear_upsample_x2(x1)                     # bf16 [N, C1, 2H, 2W]
        if x2 is not None:
            diffY = x2.shape[2] - x1.shape[2]
            diffX = x2.shape[3] - x1.shape[3]
            x1 = jnp.pad(
                x1,
                ((0, 0), (0, 0),
                 (diffY // 2, diffY - diffY // 2),
                 (diffX // 2, diffX - diffX // 2)),
            )
            x = jnp.concatenate([x2.astype(jnp.bfloat16), x1], axis=1)
        else:
            x = x1
        x = conv3x3_in_relu(x, self.w1, out_dtype=jnp.bfloat16)   # conv -> IN -> ReLU (bf16 mid)
        x = conv3x3_in_relu(x, self.w2, out_dtype=jnp.float32)    # conv -> IN -> ReLU (f32 out)
        return x


if __name__ == "__main__":
    key = jax.random.PRNGKey(0)
    kx1, kx2, kp = jax.random.split(key, 3)

    # Small UNet-style shapes: x1 is the low-res feature map, x2 the skip connection.
    N, C1, H, W = 2, 4, 8, 8          # x1: [2, 4, 8, 8]
    C2 = 4                            # x2: [2, 4, 16, 16]
    in_channels = C1 + C2             # 8 (channels after concat)
    out_channels = 4

    x1 = jax.random.normal(kx1, (N, C1, H, W), jnp.float32)
    x2 = jax.random.normal(kx2, (N, C2, 2 * H, 2 * W), jnp.float32)

    up = UpPallas(in_channels, out_channels, kp)
    y = up(x1, x2)
    jax.block_until_ready(y)

    assert y.shape == (N, out_channels, 2 * H, 2 * W), y.shape
    assert bool(jnp.all(jnp.isfinite(y)))
    print("KERNEL_OK")
</pallas_src>

<mosaic_0001>
module attributes {stable_mosaic.version = 11 : i64} {
  func.func @_upsample_kernel(%arg0: i32, %arg1: memref<1x4x8x8xf32, #tpu.memory_space<vmem>>, %arg2: memref<8x16xf32, #tpu.memory_space<vmem>>, %arg3: memref<16x8xf32, #tpu.memory_space<vmem>>, %arg4: memref<1x4x16x16xbf16, #tpu.memory_space<vmem>>) attributes {dimension_semantics = [#tpu.dimension_semantics<parallel>], iteration_bounds = array<i64: 2>, scalar_prefetch = 0 : i64, scratch_operands = 0 : i64, tpu.core_type = #tpu.core_type<tc>, window_params = [{transform_indices = @transform_0, window_bounds = array<i64: 1, 4, 8, 8>}, {pipeline_mode = #tpu.pipeline_mode<synchronous>, transform_indices = @transform_1, window_bounds = array<i64: 8, 16>}, {pipeline_mode = #tpu.pipeline_mode<synchronous>, transform_indices = @transform_2, window_bounds = array<i64: 16, 8>}, {transform_indices = @transform_3, window_bounds = array<i64: 1, 4, 16, 16>}]} {
    %c0 = arith.constant 0 : index
    %c0_0 = arith.constant 0 : index
    %c0_1 = arith.constant 0 : index
    %c0_2 = arith.constant 0 : index
    %0 = vector.load %arg1[%c0, %c0_0, %c0_1, %c0_2] : memref<1x4x8x8xf32, #tpu.memory_space<vmem>>, vector<1x4x8x8xf32>
    %1 = vector.shape_cast %0 : vector<1x4x8x8xf32> to vector<4x8x8xf32>
    %2 = vector.shape_cast %1 : vector<4x8x8xf32> to vector<32x8xf32>
    %c0_3 = arith.constant 0 : index
    %c0_4 = arith.constant 0 : index
    %3 = vector.load %arg2[%c0_3, %c0_4] : memref<8x16xf32, #tpu.memory_space<vmem>>, vector<8x16xf32>
    %cst = arith.constant dense<0.000000e+00> : vector<32x16xf32>
    %4 = tpu.matmul %2, %3, %cst {dimension_numbers = #tpu.dot_dimension_numbers<[1], [0], [0], [1], [0, 0, 1, 1], [], []>} : vector<32x8xf32>, vector<8x16xf32>, vector<32x16xf32> -> vector<32x16xf32>
    %5 = vector.shape_cast %4 : vector<32x16xf32> to vector<4x8x16xf32>
    %c0_5 = arith.constant 0 : index
    %c0_6 = arith.constant 0 : index
    %6 = vector.load %arg3[%c0_5, %c0_6] : memref<16x8xf32, #tpu.memory_space<vmem>>, vector<16x8xf32>
    %7 = vector.shape_cast %6 : vector<16x8xf32> to vector<1x16x8xf32>
    %8 = vector.shape_cast %7 : vector<1x16x8xf32> to vector<1x16x8xf32>
    %9 = vector.broadcast %8 : vector<1x16x8xf32> to vector<4x16x8xf32>
    %cst_7 = arith.constant dense<0.000000e+00> : vector<4x16x16xf32>
    %10 = tpu.matmul %9, %5, %cst_7 {dimension_numbers = #tpu.dot_dimension_numbers<[2], [1], [1], [2], [0, 0, 0, 1, 1, 2], [0], [0]>} : vector<4x16x8xf32>, vector<4x8x16xf32>, vector<4x16x16xf32> -> vector<4x16x16xf32>
    %11 = arith.truncf %10 : vector<4x16x16xf32> to vector<4x16x16xbf16>
    %c0_8 = arith.constant 0 : index
    %c0_9 = arith.constant 0 : index
    %c0_10 = arith.constant 0 : index
    %c0_11 = arith.constant 0 : index
    %12 = vector.load %arg4[%c0_8, %c0_9, %c0_10, %c0_11] : memref<1x4x16x16xbf16, #tpu.memory_space<vmem>>, vector<1x4x16x16xbf16>
    %13 = vector.shape_cast %12 : vector<1x4x16x16xbf16> to vector<4x16x16xbf16>
    %14 = vector.shape_cast %11 : vector<4x16x16xbf16> to vector<1x4x16x16xbf16>
    tpu.vector_store %arg4[%c0_8, %c0_9, %c0_10, %c0_11], %14 {strides = array<i32>} : memref<1x4x16x16xbf16, #tpu.memory_space<vmem>>, vector<1x4x16x16xbf16>,
    return
  }
  func.func @transform_0(%arg0: i32) -> (i32, i32, i32, i32) {
    %c0_i32 = arith.constant 0 : i32
    %c0_i32_0 = arith.constant 0 : i32
    %c0_i32_1 = arith.constant 0 : i32
    %c0_i32_2 = arith.constant 0 : i32
    return %arg0, %c0_i32, %c0_i32_0, %c0_i32_1 : i32, i32, i32, i32
  }
  func.func @transform_1(%arg0: i32) -> (i32, i32) {
    %c0_i32 = arith.constant 0 : i32
    %c0_i32_0 = arith.constant 0 : i32
    %c0_i32_1 = arith.constant 0 : i32
    return %c0_i32, %c0_i32_0 : i32, i32
  }
  func.func @transform_2(%arg0: i32) -> (i32, i32) {
    %c0_i32 = arith.constant 0 : i32
    %c0_i32_0 = arith.constant 0 : i32
    %c0_i32_1 = arith.constant 0 : i32
    return %c0_i32, %c0_i32_0 : i32, i32
  }
  func.func @transform_3(%arg0: i32) -> (i32, i32, i32, i32) {
    %c0_i32 = arith.constant 0 : i32
    %c0_i32_0 = arith.constant 0 : i32
    %c0_i32_1 = arith.constant 0 : i32
    %c0_i32_2 = arith.constant 0 : i32
    return %arg0, %c0_i32, %c0_i32_0, %c0_i32_1 : i32, i32, i32, i32
  }
}

</mosaic_0001>

<llo_original>
// kernel: tpu_custom_call.1
$region0: #{tpu_custom_call.1}
  #allocation0 [shape = 'u32[]', space=smem, size = 0x4, offset = 0x4, fixed_abs, tag = 'smem constant byte address 0x4 - core index']
  #allocation1 [shape = 'u32[144,128]{1,0:T(1,128)}', space=vmem, size = 0x12000, scoped, tag = 'internal scratch']
  %s0 = inlined_call_operand.hbm [shape: f32[2,4,8,8], index: 0, kind: input, shape index: {}]
  %s1 = inlined_call_operand.vmem [shape: f32[8,16], index: 1, kind: input, shape index: {}]
  %s2 = inlined_call_operand.vmem [shape: f32[16,8], index: 2, kind: input, shape index: {}]
  %s3 = inlined_call_operand.hbm [shape: bf16[2,4,16,16], index: 3, kind: output, shape index: {}]
  %s4 = sld [smem:[#allocation0]]
  $region49: #{tpu_custom_call.1} parent=0
    _
  %s6 = ssub.s32 1, %s4
  %s7 = scalar_select 0, %s6, %s4
  $region1: #{tpu_custom_call.1} parent=0
    #allocation2 [shape = 'u8[32768]{0}', space=vmem, size = 0x8000, scoped, tag = 'input window, operand 0']
    #allocation3 [shape = 's32[2]{0}', space=sflag, size = 0x8, scoped, tag = 'scoped memory for tpu_custom_call.1']
    #allocation4 [shape = 's32[2]{0}', space=sflag, size = 0x8, scoped, tag = 'scoped memory for tpu_custom_call.1']
    #allocation5 [shape = 'u8[32768]{0}', space=vmem, size = 0x8000, scoped, tag = 'output window, operand 0']
    %8 = vsyncpa [#allocation3], 0
    %s9 = scalar_lea.sflag [#allocation3], 1
    %10 = vsyncpa %s9, 0
    %11 = vsyncpa [#allocation4], 0
    %s12 = scalar_lea.sflag [#allocation4], 1
    %13 = vsyncpa %s12, 0
    loop: start=0, step=1, limit=4
    $region2: #{tpu_custom_call.1} parent=1 // loop_pre_header
      _
    $region3: #{tpu_custom_call.1} parent=1 // loop_header
      %s15 = sphi 0, %s19
      %p16 = scmp.ge.s32.totalorder %s15, 4
      %s25 = sphi 0, %s27
      %s28 = sphi 0, %s25
      %s29 = sphi 0, %s28
      %s45 = sphi 0, %s29
      %s49 = sphi 0, %s49
      %s51 = sphi 0, %s49
      %s52 = sphi 0, %s51
      %s66 = sphi 0, %s52
      %s70 = sphi 0, %s70
      %s72 = sphi 0, %s70
      %s73 = sphi 0, %s72
      %s87 = sphi 0, %s73
      %s93 = sphi 0, %s95
      %s96 = sphi 0, %s93
      %s97 = sphi 0, %s96
      %s113 = sphi 0, %s97
    $region4: #{tpu_custom_call.1} parent=1 // loop_header_branch
      %18 = sbr.rel (%p16) target = $region8
    $region5: #{tpu_custom_call.1} parent=1 // loop_body
      %s20 = ssub.s32 %s15, 1
      %s21 = ssub.s32 %s15, 2
      %s22 = sadd.s32 %s15, 1
      %s23 = ssub.s32 %s15, %s22
      %p24 = scmp.eq.s32.totalorder %s23, 0
      %s26 = sadd.s32 %s25, 1
      %s27 = scalar_select %p24, %s25, %s26
      %p30 = pneg %p24
      %p31 = scmp.eq.s32.totalorder %s15, 1
      %p32 = por %p30, %p31
      %p33 = scmp.ne.s32.totalorder %s25, %s28
      %p34 = scmp.eq.s32.totalorder %s15, 0
      %p35 = por %p33, %p34
      %p36 = scmp.ne.s32.totalorder %s25, %s28
      %p37 = scmp.eq.s32.totalorder %s20, 1
      %p38 = por %p36, %p37
      %p39 = scmp.ne.s32.totalorder %s28, %s29
      %p40 = scmp.eq.s32.totalorder %s20, 0
      %p41 = por %p39, %p40
      %p42 = scmp.ne.s32.totalorder %s28, %s29
      %p43 = scmp.eq.s32.totalorder %s21, 1
      %p44 = por %p42, %p43
      %p46 = scmp.ne.s32.totalorder %s29, %s45
      %p47 = scmp.eq.s32.totalorder %s21, 0
      %p48 = por %p46, %p47
      %s50 = sadd.s32 %s49, 1
      %p53 = scmp.eq.s32.totalorder %s15, 1
      %p54 = scmp.ne.s32.totalorder %s49, %s51
      %p55 = scmp.eq.s32.totalorder %s15, 0
      %p56 = por %p54, %p55
      %p57 = scmp.ne.s32.totalorder %s49, %s51
      %p58 = scmp.eq.s32.totalorder %s20, 1
      %p59 = por %p57, %p58
      %p60 = scmp.ne.s32.totalorder %s51, %s52
      %p61 = scmp.eq.s32.totalorder %s20, 0
      %p62 = por %p60, %p61
      %p63 = scmp.ne.s32.totalorder %s51, %s52
      %p64 = scmp.eq.s32.totalorder %s21, 1
      %p65 = por %p63, %p64
      %p67 = scmp.ne.s32.totalorder %s52, %s66
      %p68 = scmp.eq.s32.totalorder %s21, 0
      %p69 = por %p67, %p68
      %s71 = sadd.s32 %s70, 1
      %p74 = scmp.eq.s32.totalorder %s15, 1
      %p75 = scmp.ne.s32.totalorder %s70, %s72
      %p76 = scmp.eq.s32.totalorder %s15, 0
      %p77 = por %p75, %p76
      %p78 = scmp.ne.s32.totalorder %s70, %s72
      %p79 = scmp.eq.s32.totalorder %s20, 1
      %p80 = por %p78, %p79
      %p81 = scmp.ne.s32.totalorder %s72, %s73
      %p82 = scmp.eq.s32.totalorder %s20, 0
      %p83 = por %p81, %p82
      %p84 = scmp.ne.s32.totalorder %s72, %s73
      %p85 = scmp.eq.s32.totalorder %s21, 1
      %p86 = por %p84, %p85
      %p88 = scmp.ne.s32.totalorder %s73, %s87
      %p89 = scmp.eq.s32.totalorder %s21, 0
      %p90 = por %p88, %p89
      %s91 = ssub.s32 %s15, %s22
      %p92 = scmp.eq.s32.totalorder %s91, 0
      %s94 = sadd.s32 %s93, 1
      %s95 = scalar_select %p92, %s93, %s94
      %p98 = pneg %p92
      %p99 = scmp.eq.s32.totalorder %s15, 1
      %p100 = por %p98, %p99
      %p101 = scmp.ne.s32.totalorder %s93, %s96
      %p102 = scmp.eq.s32.totalorder %s15, 0
      %p103 = por %p101, %p102
      %p104 = scmp.ne.s32.totalorder %s93, %s96
      %p105 = scmp.eq.s32.totalorder %s20, 1
      %p106 = por %p104, %p105
      %p107 = scmp.ne.s32.totalorder %s96, %s97
      %p108 = scmp.eq.s32.totalorder %s20, 0
      %p109 = por %p107, %p108
      %p110 = scmp.ne.s32.totalorder %s96, %s97
      %p111 = scmp.eq.s32.totalorder %s21, 1
      %p112 = por %p110, %p111
      %p114 = scmp.ne.s32.totalorder %s97, %s113
      %p115 = scmp.eq.s32.totalorder %s21, 0
      %p116 = por %p114, %p115
      %p117 = scmp.le.s32.totalorder 1, %s15
      %p118 = scmp.lt.s32.totalorder %s15, 3
      %p119 = pnand %p117, %p118
      %p120 = pneg %p119
      // Predicated region
      $region9: #{tpu_custom_call.1} parent=5 // pred_check
        _
      $region10: #{tpu_custom_call.1} parent=5 // pred_check_branch
        %122 = sbr.rel (%p119) target = $region12
      $region11: #{tpu_custom_call.1} parent=5 // pred_region
        %s123 = ssub.s32 %s15, 1
        // Predicated region
        $region13: #{tpu_custom_call.1} parent=11 // pred_check
          %p124 = pneg %p62
        $region14: #{tpu_custom_call.1} parent=11 // pred_check_branch
          %126 = sbr.rel (%p124) target = $region16
        $region15: #{tpu_custom_call.1} parent=11 // pred_region
          _
        $region16: #{tpu_custom_call.1} parent=11 // pred_fallthru
          _
        // Predicated region
        $region17: #{tpu_custom_call.1} parent=11 // pred_check
          %p127 = pneg %p83
        $region18: #{tpu_custom_call.1} parent=11 // pred_check_branch
          %129 = sbr.rel (%p127) target = $region20
        $region19: #{tpu_custom_call.1} parent=11 // pred_region
          _
        $region20: #{tpu_custom_call.1} parent=11 // pred_fallthru
          _
      $region12: #{tpu_custom_call.1} parent=5 // pred_fallthru
        _
      %p130 = scmp.lt.s32.totalorder %s15, 2
      // Predicated region
      $region21: #{tpu_custom_call.1} parent=5 // pred_check
        %p131 = pneg %p130
      $region22: #{tpu_custom_call.1} parent=5 // pred_check_branch
        %133 = sbr.rel (%p131) target = $region24
      $region23: #{tpu_custom_call.1} parent=5 // pred_region
        // Predicated region
        $region25: #{tpu_custom_call.1} parent=23 // pred_check
          %p134 = pneg %p35
        $region26: #{tpu_custom_call.1} parent=23 // pred_check_branch
          %136 = sbr.rel (%p134) target = $region28
        $region27: #{tpu_custom_call.1} parent=23 // pred_region
          %s137 = sand.u32 %s25, 1
          %s138 = scalar_lea.sflag [#allocation3], %s137
          %s139 = sand.u32 %s25, 1
          %s140 = smul.addr %s139, 32
          %s141 = scalar_lea.vmem [#allocation2], %s140
          %s143 = ssub.s32 512, 512
          %144 = vsyncadd %s138, %s143
          %s145 = smul.addr %s15, 4
          %s146 = smul.addr %s145, 128
          %s147 = scalar_lea.hbm %s0, %s146
          %s148 = sshll.u32 %s141, 4
          %s149 = int_to_ptr.vmem [resolvable:$true] %s148
          %154 = dma.hbm_to_vmem [thread:$0]  %s147, 512, %s149, %s138, 128, 128, 8
        $region28: #{tpu_custom_call.1} parent=23 // pred_fallthru
          _
      $region24: #{tpu_custom_call.1} parent=5 // pred_fallthru
        _
      %p155 = scmp.le.s32.totalorder 1, %s15
      %p156 = scmp.lt.s32.totalorder %s15, 3
      %p157 = pnand %p155, %p156
      %p158 = pneg %p157
      // Predicated region
      $region29: #{tpu_custom_call.1} parent=5 // pred_check
        _
      $region30: #{tpu_custom_call.1} parent=5 // pred_check_branch
        %160 = sbr.rel (%p157) target = $region32
      $region31: #{tpu_custom_call.1} parent=5 // pred_region
        %s161 = ssub.s32 %s15, 1
        %s162 = sand.u32 %s28, 1
        %s163 = scalar_lea.sflag [#allocation3], %s162
        %s164 = sand.u32 %s28, 1
        %s165 = smul.addr %s164, 32
        %s166 = scalar_lea.vmem [#allocation2], %s165
        // Predicated region
        $region33: #{tpu_custom_call.1} parent=31 // pred_check
          %p167 = pneg %p41
        $region34: #{tpu_custom_call.1} parent=31 // pred_check_branch
          %169 = sbr.rel (%p167) target = $region36
        $region35: #{tpu_custom_call.1} parent=31 // pred_region
          %170 = dma.done %s163, 512
        $region36: #{tpu_custom_call.1} parent=31 // pred_fallthru
          _
        %s171 = sand.u32 %s28, 1
        %s172 = scalar_lea.sflag [#allocation3], %s171
        %s173 = sand.u32 %s28, 1
        %s174 = smul.addr %s173, 32
        %s175 = scalar_lea.vmem [#allocation2], %s174
        %p176 = pneg %p41
        %p177 = pneg %p38
        %p178 = pneg %p62
        %p179 = pneg %p59
        %p180 = pneg %p83
        %p181 = pneg %p80
        %p182 = pneg %p109
        %p183 = pneg %p106
        %s184 = sand.u32 %s96, 1
        %s185 = scalar_lea.sflag [#allocation4], %s184
        %s186 = sand.u32 %s96, 1
        %s187 = smul.addr %s186, 32
        %s188 = scalar_lea.vmem [#allocation5], %s187
        %v189 = vld [vmem:[%s166] sm:$0xff]
        %v190 = vld [vmem:[%s166 + $0x8] sm:$0xff]
        %v191 = vld [vmem:[%s166 + $0x10] sm:$0xff]
        %v192 = vld [vmem:[%s166 + $0x18] sm:$0xff]
        %v193 = vld [vmem:[%s1] sm:$0xff]
        %vm194 = vcmask 64512
        %v196 = vsel %vm194, %v189, 0
        %v199 = vsel %vm194, %v190, 0
        %v202 = vsel %vm194, %v191, 0
        %v205 = vsel %vm194, %v192, 0
        %207 = vmatprep.subr.mxu0 0.0
        %208 = vmatpush1.msra.mxu0 0.0
        %209 = vmatprep.subr.mxu0 0.0
        %210 = vmatpush1.msra.mxu0 0.0
        %211 = vmatprep.subr.mxu0 0.0
        %212 = vmatpush1.msra.mxu0 0.0
        %213 = vmatprep.subr.mxu0 0.0
        %214 = vmatpush1.msra.mxu0 0.0
        %215 = vmatprep.subr.mxu0 0.0
        %216 = vmatpush1.msra.mxu0 0.0
        %217 = vmatprep.subr.mxu0 0.0
        %218 = vmatpush1.msra.mxu0 0.0
        %219 = vmatprep.subr.mxu0 0.0
        %220 = vmatpush1.msra.mxu0 0.0
        %221 = vmatprep.subr.mxu0 0.0
        %222 = vmatpush1.msra.mxu0 0.0
        %223 = vmatprep.subr.mxu0 0.0
        %224 = vmatpush1.msra.mxu0 0.0
        %225 = vmatprep.subr.mxu0 0.0
        %226 = vmatpush1.msra.mxu0 0.0
        %227 = vmatprep.subr.mxu0 0.0
        %228 = vmatpush1.msra.mxu0 0.0
        %229 = vmatprep.subr.mxu0 0.0
        %230 = vmatpush1.msra.mxu0 0.0
        %231 = vmatprep.subr.mxu0 0.0
        %232 = vmatpush1.msra.mxu0 0.0
        %233 = vmatprep.subr.mxu0 0.0
        %234 = vmatpush1.msra.mxu0 0.0
        %235 = vmatprep.subr.mxu0 0.0
        %236 = vmatpush1.msra.mxu0 0.0
        %237 = vmatprep.subr.mxu0 0.0
        %238 = vmatpush1.msra.mxu0 %v193
        %239 = vmatprep.subr.mxu0 0.0
        %240 = vmatpush2.msra.mxu0 0.0
        %241 = vmatprep.subr.mxu0 0.0
        %242 = vmatpush2.msra.mxu0 0.0
        %243 = vmatprep.subr.mxu0 0.0
        %244 = vmatpush2.msra.mxu0 0.0
        %245 = vmatprep.subr.mxu0 0.0
        %246 = vmatpush2.msra.mxu0 0.0
        %247 = vmatprep.subr.mxu0 0.0
        %248 = vmatpush2.msra.mxu0 0.0
        %249 = vmatprep.subr.mxu0 0.0
        %250 = vmatpush2.msra.mxu0 0.0
        %251 = vmatprep.subr.mxu0 0.0
        %252 = vmatpush2.msra.mxu0 0.0
        %253 = vmatprep.subr.mxu0 0.0
        %254 = vmatpush2.msra.mxu0 0.0
        %255 = vmatprep.subr.mxu0 0.0
        %256 = vmatpush2.msra.mxu0 0.0
        %257 = vmatprep.subr.mxu0 0.0
        %258 = vmatpush2.msra.mxu0 0.0
        %259 = vmatprep.subr.mxu0 0.0
        %260 = vmatpush2.msra.mxu0 0.0
        %261 = vmatprep.subr.mxu0 0.0
        %262 = vmatpush2.msra.mxu0 0.0
        %263 = vmatprep.subr.mxu0 0.0
        %264 = vmatpush2.msra.mxu0 0.0
        %265 = vmatprep.subr.mxu0 0.0
        %266 = vmatpush2.msra.mxu0 0.0
        %267 = vmatprep.subr.mxu0 0.0
        %268 = vmatpush2.msra.mxu0 0.0
        %269 = vmatprep.subr.mxu0 0.0
        %270 = vmatpush2.msra.mxu0 0.0
        %271 = vmatprep.mubr.f32.mxu0 0.0
        %272 = vmatmul.mubr.f32.gmra.mxu0 %v196
        %v273 = vpop.f32.mrf.mxu0
        %v274 = vadd.f32 0.0, %v273
        %v275 = vpop.f32.mrf.mxu0
        %276 = vmatprep.mubr.f32.mxu0 0.0
        %277 = vmatmul.mubr.f32.gmra.mxu0 %v199
        %v278 = vpop.f32.mrf.mxu0
        %v279 = vadd.f32 0.0, %v278
        %v280 = vpop.f32.mrf.mxu0
        %281 = vmatprep.mubr.f32.mxu0 0.0
        %282 = vmatmul.mubr.f32.gmra.mxu0 %v202
        %v283 = vpop.f32.mrf.mxu0
        %v284 = vadd.f32 0.0, %v283
        %v285 = vpop.f32.mrf.mxu0
        %286 = vmatprep.mubr.f32.mxu0 0.0
        %287 = vmatmul.mubr.f32.gmra.mxu0 %v205
        %v288 = vpop.f32.mrf.mxu0
        %v289 = vadd.f32 0.0, %v288
        %v290 = vpop.f32.mrf.mxu0
        %291 = vdwg.mxu0
        %v292 = vld [vmem:[%s2] sm:$0xff]
        %v293 = vld [vmem:[%s2 + $0x8] sm:$0xff]
        %v295 = vsel %vm194, %v292, 0
        %v298 = vsel %vm194, %v293, 0
        %300 = vmatprep.subr.mxu0 0.0
        %301 = vmatpush1.msra.mxu0 0.0
        %302 = vmatprep.subr.mxu0 0.0
        %303 = vmatpush1.msra.mxu0 0.0
        %304 = vmatprep.subr.mxu0 0.0
        %305 = vmatpush1.msra.mxu0 0.0
        %306 = vmatprep.subr.mxu0 0.0
        %307 = vmatpush1.msra.mxu0 0.0
        %308 = vmatprep.subr.mxu0 0.0
        %309 = vmatpush1.msra.mxu0 0.0
        %310 = vmatprep.subr.mxu0 0.0
        %311 = vmatpush1.msra.mxu0 0.0
        %312 = vmatprep.subr.mxu0 0.0
        %313 = vmatpush1.msra.mxu0 0.0
        %314 = vmatprep.subr.mxu0 0.0
        %315 = vmatpush1.msra.mxu0 0.0
        %316 = vmatprep.subr.mxu0 0.0
        %317 = vmatpush1.msra.mxu0 0.0
        %318 = vmatprep.subr.mxu0 0.0
        %319 = vmatpush1.msra.mxu0 0.0
        %320 = vmatprep.subr.mxu0 0.0
        %321 = vmatpush1.msra.mxu0 0.0
        %322 = vmatprep.subr.mxu0 0.0
        %323 = vmatpush1.msra.mxu0 0.0
        %324 = vmatprep.subr.mxu0 0.0
        %325 = vmatpush1.msra.mxu0 0.0
        %326 = vmatprep.subr.mxu0 0.0
        %327 = vmatpush1.msra.mxu0 0.0
        %328 = vmatprep.subr.mxu0 0.0
        %329 = vmatpush1.msra.mxu0 0.0
        %330 = vmatprep.subr.mxu0 0.0
        %331 = vmatpush1.msra.mxu0 %v274
        %332 = vmatprep.subr.mxu0 0.0
        %333 = vmatpush2.msra.mxu0 0.0
        %334 = vmatprep.subr.mxu0 0.0
        %335 = vmatpush2.msra.mxu0 0.0
        %336 = vmatprep.subr.mxu0 0.0
        %337 = vmatpush2.msra.mxu0 0.0
        %338 = vmatprep.subr.mxu0 0.0
        %339 = vmatpush2.msra.mxu0 0.0
        %340 = vmatprep.subr.mxu0 0.0
        %341 = vmatpush2.msra.mxu0 0.0
        %342 = vmatprep.subr.mxu0 0.0
        %343 = vmatpush2.msra.mxu0 0.0
        %344 = vmatprep.subr.mxu0 0.0
        %345 = vmatpush2.msra.mxu0 0.0
        %346 = vmatprep.subr.mxu0 0.0
        %347 = vmatpush2.msra.mxu0 0.0
        %348 = vmatprep.subr.mxu0 0.0
        %349 = vmatpush2.msra.mxu0 0.0
        %350 = vmatprep.subr.mxu0 0.0
        %351 = vmatpush2.msra.mxu0 0.0
        %352 = vmatprep.subr.mxu0 0.0
        %353 = vmatpush2.msra.mxu0 0.0
        %354 = vmatprep.subr.mxu0 0.0
        %355 = vmatpush2.msra.mxu0 0.0
        %356 = vmatprep.subr.mxu0 0.0
        %357 = vmatpush2.msra.mxu0 0.0
        %358 = vmatprep.subr.mxu0 0.0
        %359 = vmatpush2.msra.mxu0 0.0
        %360 = vmatprep.subr.mxu0 0.0
        %361 = vmatpush2.msra.mxu0 0.0
        %362 = vmatprep.subr.mxu0 0.0
        %363 = vmatpush2.msra.mxu0 0.0
        %364 = vmatprep.mubr.f32.mxu0 0.0
        %365 = vmatmul.mubr.f32.gmra.mxu0 %v295
        %v366 = vpop.f32.mrf.mxu0
        %v367 = vadd.f32 0.0, %v366
        %v368 = vpop.f32.mrf.mxu0
        %369 = vmatprep.mubr.f32.mxu0 0.0
        %370 = vmatmul.mubr.f32.gmra.mxu0 %v298
        %v371 = vpop.f32.mrf.mxu0
        %v372 = vadd.f32 0.0, %v371
        %v373 = vpop.f32.mrf.mxu0
        %374 = vdwg.mxu0
        %375 = vmatprep.subr.mxu0 0.0
        %376 = vmatpush1.msra.mxu0 0.0
        %377 = vmatprep.subr.mxu0 0.0
        %378 = vmatpush1.msra.mxu0 0.0
        %379 = vmatprep.subr.mxu0 0.0
        %380 = vmatpush1.msra.mxu0 0.0
        %381 = vmatprep.subr.mxu0 0.0
        %382 = vmatpush1.msra.mxu0 0.0
        %383 = vmatprep.subr.mxu0 0.0
        %384 = vmatpush1.msra.mxu0 0.0
        %385 = vmatprep.subr.mxu0 0.0
        %386 = vmatpush1.msra.mxu0 0.0
        %387 = vmatprep.subr.mxu0 0.0
        %388 = vmatpush1.msra.mxu0 0.0
        %389 = vmatprep.subr.mxu0 0.0
        %390 = vmatpush1.msra.mxu0 0.0
        %391 = vmatprep.subr.mxu0 0.0
        %392 = vmatpush1.msra.mxu0 0.0
        %393 = vmatprep.subr.mxu0 0.0
        %394 = vmatpush1.msra.mxu0 0.0
        %395 = vmatprep.subr.mxu0 0.0
        %396 = vmatpush1.msra.mxu0 0.0
        %397 = vmatprep.subr.mxu0 0.0
        %398 = vmatpush1.msra.mxu0 0.0
        %399 = vmatprep.subr.mxu0 0.0
        %400 = vmatpush1.msra.mxu0 0.0
        %401 = vmatprep.subr.mxu0 0.0
        %402 = vmatpush1.msra.mxu0 0.0
        %403 = vmatprep.subr.mxu0 0.0
        %404 = vmatpush1.msra.mxu0 0.0
        %405 = vmatprep.subr.mxu0 0.0
        %406 = vmatpush1.msra.mxu0 %v279
        %407 = vmatprep.subr.mxu0 0.0
        %408 = vmatpush2.msra.mxu0 0.0
        %409 = vmatprep.subr.mxu0 0.0
        %410 = vmatpush2.msra.mxu0 0.0
        %411 = vmatprep.subr.mxu0 0.0
        %412 = vmatpush2.msra.mxu0 0.0
        %413 = vmatprep.subr.mxu0 0.0
        %414 = vmatpush2.msra.mxu0 0.0
        %415 = vmatprep.subr.mxu0 0.0
        %416 = vmatpush2.msra.mxu0 0.0
        %417 = vmatprep.subr.mxu0 0.0
        %418 = vmatpush2.msra.mxu0 0.0
        %419 = vmatprep.subr.mxu0 0.0
        %420 = vmatpush2.msra.mxu0 0.0
        %421 = vmatprep.subr.mxu0 0.0
        %422 = vmatpush2.msra.mxu0 0.0
        %423 = vmatprep.subr.mxu0 0.0
        %424 = vmatpush2.msra.mxu0 0.0
        %425 = vmatprep.subr.mxu0 0.0
        %426 = vmatpush2.msra.mxu0 0.0
        %427 = vmatprep.subr.mxu0 0.0
        %428 = vmatpush2.msra.mxu0 0.0
        %429 = vmatprep.subr.mxu0 0.0
        %430 = vmatpush2.msra.mxu0 0.0
        %431 = vmatprep.subr.mxu0 0.0
        %432 = vmatpush2.msra.mxu0 0.0
        %433 = vmatprep.subr.mxu0 0.0
        %434 = vmatpush2.msra.mxu0 0.0
        %435 = vmatprep.subr.mxu0 0.0
        %436 = vmatpush2.msra.mxu0 0.0
        %437 = vmatprep.subr.mxu0 0.0
        %438 = vmatpush2.msra.mxu0 0.0
        %439 = vmatprep.mubr.f32.mxu0 0.0
        %440 = vmatmul.mubr.f32.gmra.mxu0 %v295
        %v441 = vpop.f32.mrf.mxu0
        %v442 = vadd.f32 0.0, %v441
        %v443 = vpop.f32.mrf.mxu0
        %444 = vmatprep.mubr.f32.mxu0 0.0
        %445 = vmatmul.mubr.f32.gmra.mxu0 %v298
        %v446 = vpop.f32.mrf.mxu0
        %v447 = vadd.f32 0.0, %v446
        %v448 = vpop.f32.mrf.mxu0
        %449 = vdwg.mxu0
        %450 = vmatprep.subr.mxu0 0.0
        %451 = vmatpush1.msra.mxu0 0.0
        %452 = vmatprep.subr.mxu0 0.0
        %453 = vmatpush1.msra.mxu0 0.0
        %454 = vmatprep.subr.mxu0 0.0
        %455 = vmatpush1.msra.mxu0 0.0
        %456 = vmatprep.subr.mxu0 0.0
        %457 = vmatpush1.msra.mxu0 0.0
        %458 = vmatprep.subr.mxu0 0.0
        %459 = vmatpush1.msra.mxu0 0.0
        %460 = vmatprep.subr.mxu0 0.0
        %461 = vmatpush1.msra.mxu0 0.0
        %462 = vmatprep.subr.mxu0 0.0
        %463 = vmatpush1.msra.mxu0 0.0
        %464 = vmatprep.subr.mxu0 0.0
        %465 = vmatpush1.msra.mxu0 0.0
        %466 = vmatprep.subr.mxu0 0.0
        %467 = vmatpush1.msra.mxu0 0.0
        %468 = vmatprep.subr.mxu0 0.0
        %469 = vmatpush1.msra.mxu0 0.0
        %470 = vmatprep.subr.mxu0 0.0
        %471 = vmatpush1.msra.mxu0 0.0
        %472 = vmatprep.subr.mxu0 0.0
        %473 = vmatpush1.msra.mxu0 0.0
        %474 = vmatprep.subr.mxu0 0.0
        %475 = vmatpush1.msra.mxu0 0.0
        %476 = vmatprep.subr.mxu0 0.0
        %477 = vmatpush1.msra.mxu0 0.0
        %478 = vmatprep.subr.mxu0 0.0
        %479 = vmatpush1.msra.mxu0 0.0
        %480 = vmatprep.subr.mxu0 0.0
        %481 = vmatpush1.msra.mxu0 %v284
        %482 = vmatprep.subr.mxu0 0.0
        %483 = vmatpush2.msra.mxu0 0.0
        %484 = vmatprep.subr.mxu0 0.0
        %485 = vmatpush2.msra.mxu0 0.0
        %486 = vmatprep.subr.mxu0 0.0
        %487 = vmatpush2.msra.mxu0 0.0
        %488 = vmatprep.subr.mxu0 0.0
        %489 = vmatpush2.msra.mxu0 0.0
        %490 = vmatprep.subr.mxu0 0.0
        %491 = vmatpush2.msra.mxu0 0.0
        %492 = vmatprep.subr.mxu0 0.0
        %493 = vmatpush2.msra.mxu0 0.0
        %494 = vmatprep.subr.mxu0 0.0
        %495 = vmatpush2.msra.mxu0 0.0
        %496 = vmatprep.subr.mxu0 0.0
        %497 = vmatpush2.msra.mxu0 0.0
        %498 = vmatprep.subr.mxu0 0.0
        %499 = vmatpush2.msra.mxu0 0.0
        %500 = vmatprep.subr.mxu0 0.0
        %501 = vmatpush2.msra.mxu0 0.0
        %502 = vmatprep.subr.mxu0 0.0
        %503 = vmatpush2.msra.mxu0 0.0
        %504 = vmatprep.subr.mxu0 0.0
        %505 = vmatpush2.msra.mxu0 0.0
        %506 = vmatprep.subr.mxu0 0.0
        %507 = vmatpush2.msra.mxu0 0.0
        %508 = vmatprep.subr.mxu0 0.0
        %509 = vmatpush2.msra.mxu0 0.0
        %510 = vmatprep.subr.mxu0 0.0
        %511 = vmatpush2.msra.mxu0 0.0
        %512 = vmatprep.subr.mxu0 0.0
        %513 = vmatpush2.msra.mxu0 0.0
        %514 = vmatprep.mubr.f32.mxu0 0.0
        %515 = vmatmul.mubr.f32.gmra.mxu0 %v295
        %v516 = vpop.f32.mrf.mxu0
        %v517 = vadd.f32 0.0, %v516
        %v518 = vpop.f32.mrf.mxu0
        %519 = vmatprep.mubr.f32.mxu0 0.0
        %520 = vmatmul.mubr.f32.gmra.mxu0 %v298
        %v521 = vpop.f32.mrf.mxu0
        %v522 = vadd.f32 0.0, %v521
        %v523 = vpop.f32.mrf.mxu0
        %524 = vdwg.mxu0
        %525 = vmatprep.subr.mxu0 0.0
        %526 = vmatpush1.msra.mxu0 0.0
        %527 = vmatprep.subr.mxu0 0.0
        %528 = vmatpush1.msra.mxu0 0.0
        %529 = vmatprep.subr.mxu0 0.0
        %530 = vmatpush1.msra.mxu0 0.0
        %531 = vmatprep.subr.mxu0 0.0
        %532 = vmatpush1.msra.mxu0 0.0
        %533 = vmatprep.subr.mxu0 0.0
        %534 = vmatpush1.msra.mxu0 0.0
        %535 = vmatprep.subr.mxu0 0.0
        %536 = vmatpush1.msra.mxu0 0.0
        %537 = vmatprep.subr.mxu0 0.0
        %538 = vmatpush1.msra.mxu0 0.0
        %539 = vmatprep.subr.mxu0 0.0
        %540 = vmatpush1.msra.mxu0 0.0
        %541 = vmatprep.subr.mxu0 0.0
        %542 = vmatpush1.msra.mxu0 0.0
        %543 = vmatprep.subr.mxu0 0.0
        %544 = vmatpush1.msra.mxu0 0.0
        %545 = vmatprep.subr.mxu0 0.0
        %546 = vmatpush1.msra.mxu0 0.0
        %547 = vmatprep.subr.mxu0 0.0
        %548 = vmatpush1.msra.mxu0 0.0
        %549 = vmatprep.subr.mxu0 0.0
        %550 = vmatpush1.msra.mxu0 0.0
        %551 = vmatprep.subr.mxu0 0.0
        %552 = vmatpush1.msra.mxu0 0.0
        %553 = vmatprep.subr.mxu0 0.0
        %554 = vmatpush1.msra.mxu0 0.0
        %555 = vmatprep.subr.mxu0 0.0
        %556 = vmatpush1.msra.mxu0 %v289
        %557 = vmatprep.subr.mxu0 0.0
        %558 = vmatpush2.msra.mxu0 0.0
        %559 = vmatprep.subr.mxu0 0.0
        %560 = vmatpush2.msra.mxu0 0.0
        %561 = vmatprep.subr.mxu0 0.0
        %562 = vmatpush2.msra.mxu0 0.0
        %563 = vmatprep.subr.mxu0 0.0
        %564 = vmatpush2.msra.mxu0 0.0
        %565 = vmatprep.subr.mxu0 0.0
        %566 = vmatpush2.msra.mxu0 0.0
        %567 = vmatprep.subr.mxu0 0.0
        %568 = vmatpush2.msra.mxu0 0.0
        %569 = vmatprep.subr.mxu0 0.0
        %570 = vmatpush2.msra.mxu0 0.0
        %571 = vmatprep.subr.mxu0 0.0
        %572 = vmatpush2.msra.mxu0 0.0
        %573 = vmatprep.subr.mxu0 0.0
        %574 = vmatpush2.msra.mxu0 0.0
        %575 = vmatprep.subr.mxu0 0.0
        %576 = vmatpush2.msra.mxu0 0.0
        %577 = vmatprep.subr.mxu0 0.0
        %578 = vmatpush2.msra.mxu0 0.0
        %579 = vmatprep.subr.mxu0 0.0
        %580 = vmatpush2.msra.mxu0 0.0
        %581 = vmatprep.subr.mxu0 0.0
        %582 = vmatpush2.msra.mxu0 0.0
        %583 = vmatprep.subr.mxu0 0.0
        %584 = vmatpush2.msra.mxu0 0.0
        %585 = vmatprep.subr.mxu0 0.0
        %586 = vmatpush2.msra.mxu0 0.0
        %587 = vmatprep.subr.mxu0 0.0
        %588 = vmatpush2.msra.mxu0 0.0
        %589 = vmatprep.mubr.f32.mxu0 0.0
        %590 = vmatmul.mubr.f32.gmra.mxu0 %v295
        %v591 = vpop.f32.mrf.mxu0
        %v592 = vadd.f32 0.0, %v591
        %v593 = vpop.f32.mrf.mxu0
        %594 = vmatprep.mubr.f32.mxu0 0.0
        %595 = vmatmul.mubr.f32.gmra.mxu0 %v298
        %v596 = vpop.f32.mrf.mxu0
        %v597 = vadd.f32 0.0, %v596
        %v598 = vpop.f32.mrf.mxu0
        %599 = vdwg.mxu0
        %v600 = vpack.c.bf16 %v372, %v367
        %v601 = vpack.c.bf16 %v447, %v442
        %v602 = vpack.c.bf16 %v522, %v517
        %v603 = vpack.c.bf16 %v597, %v592
        %v608 = vunpack.c.l.b16 %v600
        %v609 = vunpack.c.h.b16 %v600
        %v610 = vunpack.c.l.b16 %v601
        %v611 = vunpack.c.h.b16 %v601
        %v612 = vunpack.c.l.b16 %v602
        %v613 = vunpack.c.h.b16 %v602
        %v614 = vunpack.c.l.b16 %v603
        %v615 = vunpack.c.h.b16 %v603
        %v616 = vpack.c.b16 %v608, %v608
        %v617 = vpack.c.b16 %v609, %v609
        %v618 = vpack.c.b16 %v610, %v610
        %v619 = vpack.c.b16 %v611, %v611
        %v620 = vpack.c.b16 %v612, %v612
        %v621 = vpack.c.b16 %v613, %v613
        %v622 = vpack.c.b16 %v614, %v614
        %v623 = vpack.c.b16 %v615, %v615
        %vm632 = vcmask 125952
        %633 = vst.msk [vmem:[%s188] sm:$0xf] %vm632, %v616
        %634 = vst.msk [vmem:[%s188 + $0x4] sm:$0xf] %vm632, %v617
        %635 = vst.msk [vmem:[%s188 + $0x8] sm:$0xf] %vm632, %v618
        %636 = vst.msk [vmem:[%s188 + $0xc] sm:$0xf] %vm632, %v619
        %637 = vst.msk [vmem:[%s188 + $0x10] sm:$0xf] %vm632, %v620
        %638 = vst.msk [vmem:[%s188 + $0x14] sm:$0xf] %vm632, %v621
        %639 = vst.msk [vmem:[%s188 + $0x18] sm:$0xf] %vm632, %v622
        %640 = vst.msk [vmem:[%s188 + $0x1c] sm:$0xf] %vm632, %v623
        %s641 = sand.u32 %s96, 1
        %s642 = scalar_lea.sflag [#allocation4], %s641
        %s643 = sand.u32 %s96, 1
        %s644 = smul.addr %s643, 32
        %s645 = scalar_lea.vmem [#allocation5], %s644
        // Predicated region
        $region37: #{tpu_custom_call.1} parent=31 // pred_check
          %p646 = pneg %p106
        $region38: #{tpu_custom_call.1} parent=31 // pred_check_branch
          %648 = sbr.rel (%p646) target = $region40
        $region39: #{tpu_custom_call.1} parent=31 // pred_region
          %s650 = ssub.s32 512, 512
          %651 = vsyncadd %s642, %s650
          %s652 = smul.addr %s20, 8
          %s653 = smul.addr %s652, 64
          %s654 = scalar_lea.hbm %s3, %s653
          %s655 = sshll.u32 %s645, 4
          %s656 = int_to_ptr.vmem [resolvable:$true] %s655
          %661 = dma.vmem_to_hbm [thread:$0]  %s656, 512, %s654, %s642, 64, 64, 4
        $region40: #{tpu_custom_call.1} parent=31 // pred_fallthru
          _
      $region32: #{tpu_custom_call.1} parent=5 // pred_fallthru
        _
      %p662 = scmp.le.s32.totalorder 2, %s15
      // Predicated region
      $region41: #{tpu_custom_call.1} parent=5 // pred_check
        %p663 = pneg %p662
      $region42: #{tpu_custom_call.1} parent=5 // pred_check_branch
        %665 = sbr.rel (%p663) target = $region44
      $region43: #{tpu_custom_call.1} parent=5 // pred_region
        %s666 = ssub.s32 %s15, 2
        // Predicated region
        $region45: #{tpu_custom_call.1} parent=43 // pred_check
          %p667 = pneg %p112
        $region46: #{tpu_custom_call.1} parent=43 // pred_check_branch
          %669 = sbr.rel (%p667) target = $region48
        $region47: #{tpu_custom_call.1} parent=43 // pred_region
          %s670 = sand.u32 %s97, 1
          %s671 = scalar_lea.sflag [#allocation4], %s670
          %s672 = sand.u32 %s97, 1
          %s673 = smul.addr %s672, 32
          %s674 = scalar_lea.vmem [#allocation5], %s673
          %675 = dma.done %s671, 512
        $region48: #{tpu_custom_call.1} parent=43 // pred_fallthru
          _
      $region44: #{tpu_custom_call.1} parent=5 // pred_fallthru
        _
    $region6: #{tpu_custom_call.1} parent=1 // loop_footer
      %s19 = sadd.s32 1, %s15
    $region7: #{tpu_custom_call.1} parent=1 // loop_footer_branch
      %14 = sbr.rel target = $region3
    $region8: #{tpu_custom_call.1} parent=1 // loop_exit
      _
    %676 = vsyncpa [#allocation3], 1
    %s677 = scalar_lea.sflag [#allocation3], 1
    %678 = vsyncpa %s677, 1
    %679 = vsyncpa [#allocation4], 1
    %s680 = scalar_lea.sflag [#allocation4], 1
    %681 = vsyncpa %s680, 1

</llo_original>
